<compile_context>
chip_gen: v5e
topology: v5e:2x2
jax: 0.10.0
libtpu: 0.0.40
codegen_flags: <defaults>
</compile_context>

<pallas_src>
import functools

import jax
import jax.numpy as jnp
from jax.experimental import pallas as pl
from jax.experimental.pallas import tpu as pltpu


def mlp_kernel(x_ref,
               w1_ref, b1_ref,
               w2_ref, b2_ref,
               w3_ref, b3_ref,
               w4_ref, b4_ref,
               o_ref):
    # Cast x f32 -> bf16 on the VPU (essentially free; VPU has huge slack here).
    x = x_ref[...].astype(jnp.bfloat16)
    # fc1 + relu  (bf16 MXU inputs, f32 accumulation)
    h = jnp.dot(x, w1_ref[...], preferred_element_type=jnp.float32) + b1_ref[...]
    h = jnp.maximum(h, 0.0)
    # fc2 + relu
    h = jnp.dot(h.astype(w2_ref.dtype), w2_ref[...],
                preferred_element_type=jnp.float32) + b2_ref[...]
    h = jnp.maximum(h, 0.0)
    # fc3 + relu
    h = jnp.dot(h.astype(w3_ref.dtype), w3_ref[...],
                preferred_element_type=jnp.float32) + b3_ref[...]
    h = jnp.maximum(h, 0.0)
    # fc4 (no activation) -> direct (tb, 10) store
    o_ref[...] = (jnp.dot(h.astype(w4_ref.dtype), w4_ref[...],
                          preferred_element_type=jnp.float32)
                  + b4_ref[...]).astype(o_ref.dtype)


def _round_up(a, m):
    return (a + m - 1) // m * m


def prepare_params(params):
    """One-time parameter prep (do NOT call per forward): weights -> bf16 for the
    MXU, biases -> f32 row vectors (added to the f32 accumulator in-kernel)."""
    prepped = []
    for w, b in params:
        prepped.append((w.astype(jnp.bfloat16),
                        b.reshape(1, -1).astype(jnp.float32)))
    return tuple(prepped)


@functools.partial(jax.jit, static_argnames=("tile_b",))
def mlp_forward(x, prepped_params, *, tile_b=1024):
    """x: (B, 1, 28, 28) or (B, 784) float32. Returns (B, 10) float32 logits."""
    x2d = x.reshape(-1, 28 * 28)          # stays f32; cast happens inside the kernel
    B = x2d.shape[0]

    # Batch tile: big (default 1024) to amortize per-step overhead, but small enough
    # to give at least 2 roughly balanced grid steps when B allows (v7x megacore).
    tb = min(tile_b, max(8, _round_up(pl.cdiv(B, 2), 8)))
    grid = (pl.cdiv(B, tb),)               # ragged last tile allowed (writes clipped)

    (w1, b1), (w2, b2), (w3, b3), (w4, b4) = prepped_params
    n_out = w4.shape[1]

    def resident(shape):
        # Full-array block, constant index map -> DMA'd once, stays resident in VMEM.
        return pl.BlockSpec(shape, lambda i: (0, 0))

    flops = 2 * B * (784 * 256 + 256 * 128 + 128 * 64 + 64 * n_out)
    bytes_accessed = (B * 784 * 4 + B * n_out * 4
                      + 2 * (784 * 256 + 256 * 128 + 128 * 64 + 64 * n_out)
                      + 4 * (256 + 128 + 64 + n_out))
    cost = pl.CostEstimate(flops=flops, transcendentals=0,
                           bytes_accessed=bytes_accessed)

    out = pl.pallas_call(
        mlp_kernel,
        out_shape=jax.ShapeDtypeStruct((B, n_out), jnp.float32),
        grid=grid,
        in_specs=[
            pl.BlockSpec((tb, 28 * 28), lambda i: (i, 0)),   # x tile (double-buffered)
            resident(w1.shape), resident(b1.shape),
            resident(w2.shape), resident(b2.shape),
            resident(w3.shape), resident(b3.shape),
            resident(w4.shape), resident(b4.shape),
        ],
        out_specs=pl.BlockSpec((tb, n_out), lambda i: (i, 0)),
        compiler_params=pltpu.CompilerParams(
            dimension_semantics=("parallel",),
            vmem_limit_bytes=32 * 1024 * 1024),
        cost_estimate=cost,
    )(x2d, w1, b1, w2, b2, w3, b3, w4, b4)

    return out


def init_params(key):
    """Deterministic init mimicking nn.Linear default (U[-1/sqrt(fan_in), 1/sqrt(fan_in)]).
    Weights stored as (in_features, out_features) so the forward computes x @ W + b."""
    dims = [(28 * 28, 256), (256, 128), (128, 64), (64, 10)]
    params = []
    for (fan_in, fan_out) in dims:
        key, kw, kb = jax.random.split(key, 3)
        bound = 1.0 / jnp.sqrt(jnp.float32(fan_in))
        w = jax.random.uniform(kw, (fan_in, fan_out), jnp.float32, -bound, bound)
        b = jax.random.uniform(kb, (1, fan_out), jnp.float32, -bound, bound)
        params.append((w, b))
    return params


def ref_forward(x, params):
    """Plain-JAX reference mirroring the kernel's precision scheme
    (bf16 matmul inputs, f32 accumulation, f32 bias/ReLU)."""
    cd = jnp.bfloat16
    (w1, b1), (w2, b2), (w3, b3), (w4, b4) = params
    h = x.reshape(-1, 28 * 28).astype(cd)
    h = jnp.maximum(jnp.dot(h, w1.astype(cd),
                            preferred_element_type=jnp.float32) + b1, 0.0)
    h = jnp.maximum(jnp.dot(h.astype(cd), w2.astype(cd),
                            preferred_element_type=jnp.float32) + b2, 0.0)
    h = jnp.maximum(jnp.dot(h.astype(cd), w3.astype(cd),
                            preferred_element_type=jnp.float32) + b3, 0.0)
    return jnp.dot(h.astype(cd), w4.astype(cd),
                   preferred_element_type=jnp.float32) + b4


if __name__ == "__main__":
    key = jax.random.PRNGKey(0)
    k_x, k_p = jax.random.split(key)

    raw_params = init_params(k_p)
    params = prepare_params(raw_params)      # one-time bf16 weight prep

    # Small MNIST-like batch: (B, 1, 28, 28) NCHW
    x = jax.random.normal(k_x, (2, 1, 28, 28), dtype=jnp.float32)
    logits = mlp_forward(x, params)
    jax.block_until_ready(logits)

    assert logits.shape == (2, 10), logits.shape
    assert logits.dtype == jnp.float32
    expected = ref_forward(x, raw_params)
    assert jnp.allclose(logits, expected, atol=1e-2, rtol=1e-2), (
        jnp.max(jnp.abs(logits - expected)))

    # Exercise the ragged last-tile / multi-grid-step path (B=17 -> 2 steps, 2nd partial).
    x2 = jax.random.normal(k_x, (17, 1, 28, 28), dtype=jnp.float32)
    logits2 = mlp_forward(x2, params)
    jax.block_until_ready(logits2)
    expected2 = ref_forward(x2, raw_params)
    assert logits2.shape == (17, 10), logits2.shape
    assert jnp.allclose(logits2, expected2, atol=1e-2, rtol=1e-2), (
        jnp.max(jnp.abs(logits2 - expected2)))

    print("KERNEL_OK")
</pallas_src>

<mosaic_0001>
module attributes {stable_mosaic.version = 11 : i64} {
  func.func @mlp_kernel(%arg0: i32, %arg1: memref<8x784xf32, #tpu.memory_space<vmem>>, %arg2: memref<784x256xbf16, #tpu.memory_space<vmem>>, %arg3: memref<1x256xf32, #tpu.memory_space<vmem>>, %arg4: memref<256x128xbf16, #tpu.memory_space<vmem>>, %arg5: memref<1x128xf32, #tpu.memory_space<vmem>>, %arg6: memref<128x64xbf16, #tpu.memory_space<vmem>>, %arg7: memref<1x64xf32, #tpu.memory_space<vmem>>, %arg8: memref<64x10xbf16, #tpu.memory_space<vmem>>, %arg9: memref<1x10xf32, #tpu.memory_space<vmem>>, %arg10: memref<8x10xf32, #tpu.memory_space<vmem>>) attributes {dimension_semantics = [#tpu.dimension_semantics<parallel>], iteration_bounds = array<i64: 1>, scalar_prefetch = 0 : i64, scratch_operands = 0 : i64, tpu.core_type = #tpu.core_type<tc>, window_params = [{transform_indices = @transform_0, window_bounds = array<i64: 8, 784>}, {pipeline_mode = #tpu.pipeline_mode<synchronous>, transform_indices = @transform_1, window_bounds = array<i64: 784, 256>}, {pipeline_mode = #tpu.pipeline_mode<synchronous>, transform_indices = @transform_2, window_bounds = array<i64: 1, 256>}, {pipeline_mode = #tpu.pipeline_mode<synchronous>, transform_indices = @transform_3, window_bounds = array<i64: 256, 128>}, {pipeline_mode = #tpu.pipeline_mode<synchronous>, transform_indices = @transform_4, window_bounds = array<i64: 1, 128>}, {pipeline_mode = #tpu.pipeline_mode<synchronous>, transform_indices = @transform_5, window_bounds = array<i64: 128, 64>}, {pipeline_mode = #tpu.pipeline_mode<synchronous>, transform_indices = @transform_6, window_bounds = array<i64: 1, 64>}, {pipeline_mode = #tpu.pipeline_mode<synchronous>, transform_indices = @transform_7, window_bounds = array<i64: 64, 10>}, {pipeline_mode = #tpu.pipeline_mode<synchronous>, transform_indices = @transform_8, window_bounds = array<i64: 1, 10>}, {transform_indices = @transform_9, window_bounds = array<i64: 8, 10>}]} {
    %c0 = arith.constant 0 : index
    %c0_0 = arith.constant 0 : index
    %0 = vector.load %arg1[%c0, %c0_0] : memref<8x784xf32, #tpu.memory_space<vmem>>, vector<8x784xf32>
    %1 = arith.truncf %0 : vector<8x784xf32> to vector<8x784xbf16>
    %c0_1 = arith.constant 0 : index
    %c0_2 = arith.constant 0 : index
    %2 = vector.load %arg2[%c0_1, %c0_2] : memref<784x256xbf16, #tpu.memory_space<vmem>>, vector<784x256xbf16>
    %cst = arith.constant dense<0.000000e+00> : vector<8x256xf32>
    %3 = tpu.matmul %1, %2, %cst {dimension_numbers = #tpu.dot_dimension_numbers<[1], [0], [0], [1], [0, 0, 1, 1], [], []>} : vector<8x784xbf16>, vector<784x256xbf16>, vector<8x256xf32> -> vector<8x256xf32>
    %c0_3 = arith.constant 0 : index
    %c0_4 = arith.constant 0 : index
    %4 = vector.load %arg3[%c0_3, %c0_4] : memref<1x256xf32, #tpu.memory_space<vmem>>, vector<1x256xf32>
    %5 = vector.broadcast %4 : vector<1x256xf32> to vector<8x256xf32>
    %6 = arith.addf %3, %5 : vector<8x256xf32>
    %cst_5 = arith.constant 0.000000e+00 : f32
    %7 = vector.broadcast %cst_5 : f32 to vector<8x256xf32>
    %8 = arith.maximumf %6, %7 : vector<8x256xf32>
    %9 = arith.truncf %8 : vector<8x256xf32> to vector<8x256xbf16>
    %c0_6 = arith.constant 0 : index
    %c0_7 = arith.constant 0 : index
    %10 = vector.load %arg4[%c0_6, %c0_7] : memref<256x128xbf16, #tpu.memory_space<vmem>>, vector<256x128xbf16>
    %cst_8 = arith.constant dense<0.000000e+00> : vector<8x128xf32>
    %11 = tpu.matmul %9, %10, %cst_8 {dimension_numbers = #tpu.dot_dimension_numbers<[1], [0], [0], [1], [0, 0, 1, 1], [], []>} : vector<8x256xbf16>, vector<256x128xbf16>, vector<8x128xf32> -> vector<8x128xf32>
    %c0_9 = arith.constant 0 : index
    %c0_10 = arith.constant 0 : index
    %12 = vector.load %arg5[%c0_9, %c0_10] : memref<1x128xf32, #tpu.memory_space<vmem>>, vector<1x128xf32>
    %13 = vector.broadcast %12 : vector<1x128xf32> to vector<8x128xf32>
    %14 = arith.addf %11, %13 : vector<8x128xf32>
    %cst_11 = arith.constant 0.000000e+00 : f32
    %15 = vector.broadcast %cst_11 : f32 to vector<8x128xf32>
    %16 = arith.maximumf %14, %15 : vector<8x128xf32>
    %17 = arith.truncf %16 : vector<8x128xf32> to vector<8x128xbf16>
    %c0_12 = arith.constant 0 : index
    %c0_13 = arith.constant 0 : index
    %18 = vector.load %arg6[%c0_12, %c0_13] : memref<128x64xbf16, #tpu.memory_space<vmem>>, vector<128x64xbf16>
    %cst_14 = arith.constant dense<0.000000e+00> : vector<8x64xf32>
    %19 = tpu.matmul %17, %18, %cst_14 {dimension_numbers = #tpu.dot_dimension_numbers<[1], [0], [0], [1], [0, 0, 1, 1], [], []>} : vector<8x128xbf16>, vector<128x64xbf16>, vector<8x64xf32> -> vector<8x64xf32>
    %c0_15 = arith.constant 0 : index
    %c0_16 = arith.constant 0 : index
    %20 = vector.load %arg7[%c0_15, %c0_16] : memref<1x64xf32, #tpu.memory_space<vmem>>, vector<1x64xf32>
    %21 = vector.broadcast %20 : vector<1x64xf32> to vector<8x64xf32>
    %22 = arith.addf %19, %21 : vector<8x64xf32>
    %cst_17 = arith.constant 0.000000e+00 : f32
    %23 = vector.broadcast %cst_17 : f32 to vector<8x64xf32>
    %24 = arith.maximumf %22, %23 : vector<8x64xf32>
    %25 = arith.truncf %24 : vector<8x64xf32> to vector<8x64xbf16>
    %c0_18 = arith.constant 0 : index
    %c0_19 = arith.constant 0 : index
    %26 = vector.load %arg8[%c0_18, %c0_19] : memref<64x10xbf16, #tpu.memory_space<vmem>>, vector<64x10xbf16>
    %cst_20 = arith.constant dense<0.000000e+00> : vector<8x10xf32>
    %27 = tpu.matmul %25, %26, %cst_20 {dimension_numbers = #tpu.dot_dimension_numbers<[1], [0], [0], [1], [0, 0, 1, 1], [], []>} : vector<8x64xbf16>, vector<64x10xbf16>, vector<8x10xf32> -> vector<8x10xf32>
    %c0_21 = arith.constant 0 : index
    %c0_22 = arith.constant 0 : index
    %28 = vector.load %arg9[%c0_21, %c0_22] : memref<1x10xf32, #tpu.memory_space<vmem>>, vector<1x10xf32>
    %29 = vector.broadcast %28 : vector<1x10xf32> to vector<8x10xf32>
    %30 = arith.addf %27, %29 : vector<8x10xf32>
    %c0_23 = arith.constant 0 : index
    %c0_24 = arith.constant 0 : index
    %31 = vector.load %arg10[%c0_23, %c0_24] : memref<8x10xf32, #tpu.memory_space<vmem>>, vector<8x10xf32>
    tpu.vector_store %arg10[%c0_23, %c0_24], %30 {strides = array<i32>} : memref<8x10xf32, #tpu.memory_space<vmem>>, vector<8x10xf32>,
    return
  }
  func.func @transform_0(%arg0: i32) -> (i32, i32) {
    %c0_i32 = arith.constant 0 : i32
    %c0_i32_0 = arith.constant 0 : i32
    return %arg0, %c0_i32 : i32, i32
  }
  func.func @transform_1(%arg0: i32) -> (i32, i32) {
    %c0_i32 = arith.constant 0 : i32
    %c0_i32_0 = arith.constant 0 : i32
    %c0_i32_1 = arith.constant 0 : i32
    return %c0_i32, %c0_i32_0 : i32, i32
  }
  func.func @transform_2(%arg0: i32) -> (i32, i32) {
    %c0_i32 = arith.constant 0 : i32
    %c0_i32_0 = arith.constant 0 : i32
    %c0_i32_1 = arith.constant 0 : i32
    return %c0_i32, %c0_i32_0 : i32, i32
  }
  func.func @transform_3(%arg0: i32) -> (i32, i32) {
    %c0_i32 = arith.constant 0 : i32
    %c0_i32_0 = arith.constant 0 : i32
    %c0_i32_1 = arith.constant 0 : i32
    return %c0_i32, %c0_i32_0 : i32, i32
  }
  func.func @transform_4(%arg0: i32) -> (i32, i32) {
    %c0_i32 = arith.constant 0 : i32
    %c0_i32_0 = arith.constant 0 : i32
    %c0_i32_1 = arith.constant 0 : i32
    return %c0_i32, %c0_i32_0 : i32, i32
  }
  func.func @transform_5(%arg0: i32) -> (i32, i32) {
    %c0_i32 = arith.constant 0 : i32
    %c0_i32_0 = arith.constant 0 : i32
    %c0_i32_1 = arith.constant 0 : i32
    return %c0_i32, %c0_i32_0 : i32, i32
  }
  func.func @transform_6(%arg0: i32) -> (i32, i32) {
    %c0_i32 = arith.constant 0 : i32
    %c0_i32_0 = arith.constant 0 : i32
    %c0_i32_1 = arith.constant 0 : i32
    return %c0_i32, %c0_i32_0 : i32, i32
  }
  func.func @transform_7(%arg0: i32) -> (i32, i32) {
    %c0_i32 = arith.constant 0 : i32
    %c0_i32_0 = arith.constant 0 : i32
    %c0_i32_1 = arith.constant 0 : i32
    return %c0_i32, %c0_i32_0 : i32, i32
  }
  func.func @transform_8(%arg0: i32) -> (i32, i32) {
    %c0_i32 = arith.constant 0 : i32
    %c0_i32_0 = arith.constant 0 : i32
    %c0_i32_1 = arith.constant 0 : i32
    return %c0_i32, %c0_i32_0 : i32, i32
  }
  func.func @transform_9(%arg0: i32) -> (i32, i32) {
    %c0_i32 = arith.constant 0 : i32
    %c0_i32_0 = arith.constant 0 : i32
    return %arg0, %c0_i32 : i32, i32
  }
}

</mosaic_0001>

<llo_original>
// kernel: mlp_forward.1
$region0: #{mlp_forward.1}
  #allocation0 [shape = 'u32[]', space=smem, size = 0x4, offset = 0x4, fixed_abs, tag = 'smem constant byte address 0x4 - core index']
  #allocation1 [shape = 'u32[72,128]{1,0:T(1,128)}', space=vmem, size = 0x9000, scoped, tag = 'internal scratch']
  %s0 = inlined_call_operand.vmem [shape: f32[2,784], index: 0, kind: input, shape index: {}]
  %s1 = inlined_call_operand.hbm [shape: bf16[784,256], index: 1, kind: input, shape index: {}]
  %s2 = inlined_call_operand.vmem [shape: f32[1,256], index: 2, kind: input, shape index: {}]
  %s3 = inlined_call_operand.vmem [shape: bf16[256,128], index: 3, kind: input, shape index: {}]
  %s4 = inlined_call_operand.vmem [shape: f32[1,128], index: 4, kind: input, shape index: {}]
  %s5 = inlined_call_operand.vmem [shape: bf16[128,64], index: 5, kind: input, shape index: {}]
  %s6 = inlined_call_operand.vmem [shape: f32[1,64], index: 6, kind: input, shape index: {}]
  %s7 = inlined_call_operand.vmem [shape: bf16[64,10], index: 7, kind: input, shape index: {}]
  %s8 = inlined_call_operand.vmem [shape: f32[1,10], index: 8, kind: input, shape index: {}]
  %s9 = inlined_call_operand.hbm [shape: f32[2,10], index: 9, kind: output, shape index: {}]
  %s10 = sld [smem:[#allocation0]]
  $region50: #{mlp_forward.1} parent=0
    _
  %s12 = ssub.s32 1, %s10
  %s13 = scalar_select 0, %s12, %s10
  $region1: #{mlp_forward.1} parent=0
    #allocation2 [shape = 'u8[401408]{0}', space=vmem, size = 0x62000, scoped, tag = 'input window, operand 1, single buffered']
    #allocation3 [shape = 's32[1]{0}', space=sflag, size = 0x4, scoped, tag = 'scoped memory for mlp_forward.1']
    #allocation4 [shape = 's32[1]{0}', space=sflag, size = 0x4, scoped, tag = 'scoped memory for mlp_forward.1']
    #allocation5 [shape = 'u8[4096]{0}', space=vmem, size = 0x1000, scoped, tag = 'output window, operand 0, single buffered']
    %14 = vsyncpa [#allocation3], 0
    %15 = vsyncpa [#allocation4], 0
    // Predicated region
    $region2: #{mlp_forward.1} parent=1 // pred_check
      _
    $region3: #{mlp_forward.1} parent=1 // pred_check_branch
      %17 = sbr.rel (0) target = $region5
    $region4: #{mlp_forward.1} parent=1 // pred_region
      _
    $region5: #{mlp_forward.1} parent=1 // pred_fallthru
      _
    // Predicated region
    $region6: #{mlp_forward.1} parent=1 // pred_check
      _
    $region7: #{mlp_forward.1} parent=1 // pred_check_branch
      %19 = sbr.rel (0) target = $region9
    $region8: #{mlp_forward.1} parent=1 // pred_region
      %21 = vsyncadd [#allocation3], 0
      %s22 = sshll.u32 %s1, 4
      %s23 = int_to_ptr.hbm [resolvable:$true] %s22
      %s24 = sshll.u32 [#allocation2], 4
      %s25 = int_to_ptr.vmem [resolvable:$true] %s24
      %30 = dma.hbm_to_vmem [thread:$0]  %s23, 12544, %s25, [#allocation3], 128, 128, 8
    $region9: #{mlp_forward.1} parent=1 // pred_fallthru
      _
    // Predicated region
    $region10: #{mlp_forward.1} parent=1 // pred_check
      _
    $region11: #{mlp_forward.1} parent=1 // pred_check_branch
      %32 = sbr.rel (0) target = $region13
    $region12: #{mlp_forward.1} parent=1 // pred_region
      _
    $region13: #{mlp_forward.1} parent=1 // pred_fallthru
      _
    // Predicated region
    $region14: #{mlp_forward.1} parent=1 // pred_check
      _
    $region15: #{mlp_forward.1} parent=1 // pred_check_branch
      %34 = sbr.rel (0) target = $region17
    $region16: #{mlp_forward.1} parent=1 // pred_region
      _
    $region17: #{mlp_forward.1} parent=1 // pred_fallthru
      _
    // Predicated region
    $region18: #{mlp_forward.1} parent=1 // pred_check
      _
    $region19: #{mlp_forward.1} parent=1 // pred_check_branch
      %36 = sbr.rel (0) target = $region21
    $region20: #{mlp_forward.1} parent=1 // pred_region
      _
    $region21: #{mlp_forward.1} parent=1 // pred_fallthru
      _
    // Predicated region
    $region22: #{mlp_forward.1} parent=1 // pred_check
      _
    $region23: #{mlp_forward.1} parent=1 // pred_check_branch
      %38 = sbr.rel (0) target = $region25
    $region24: #{mlp_forward.1} parent=1 // pred_region
      _
    $region25: #{mlp_forward.1} parent=1 // pred_fallthru
      _
    // Predicated region
    $region26: #{mlp_forward.1} parent=1 // pred_check
      _
    $region27: #{mlp_forward.1} parent=1 // pred_check_branch
      %40 = sbr.rel (0) target = $region29
    $region28: #{mlp_forward.1} parent=1 // pred_region
      _
    $region29: #{mlp_forward.1} parent=1 // pred_fallthru
      _
    // Predicated region
    $region30: #{mlp_forward.1} parent=1 // pred_check
      _
    $region31: #{mlp_forward.1} parent=1 // pred_check_branch
      %42 = sbr.rel (0) target = $region33
    $region32: #{mlp_forward.1} parent=1 // pred_region
      _
    $region33: #{mlp_forward.1} parent=1 // pred_fallthru
      _
    // Predicated region
    $region34: #{mlp_forward.1} parent=1 // pred_check
      _
    $region35: #{mlp_forward.1} parent=1 // pred_check_branch
      %44 = sbr.rel (0) target = $region37
    $region36: #{mlp_forward.1} parent=1 // pred_region
      _
    $region37: #{mlp_forward.1} parent=1 // pred_fallthru
      _
    // Predicated region
    $region38: #{mlp_forward.1} parent=1 // pred_check
      _
    $region39: #{mlp_forward.1} parent=1 // pred_check_branch
      %46 = sbr.rel (0) target = $region41
    $region40: #{mlp_forward.1} parent=1 // pred_region
      %48 = dma.done [#allocation3], 12544
    $region41: #{mlp_forward.1} parent=1 // pred_fallthru
      _
    %v50 = vld [vmem:[%s0] sm:$0xff]
    %v51 = vld [vmem:[%s0 + $0x8] sm:$0x3f]
    %v52 = vld [vmem:[%s0 + $0xe] sm:$0xff]
    %v53 = vld [vmem:[%s0 + $0x16] sm:$0x3f]
    %v54 = vld [vmem:[%s0 + $0x1c] sm:$0xff]
    %v55 = vld [vmem:[%s0 + $0x24] sm:$0x3f]
    %v56 = vld [vmem:[%s0 + $0x2a] sm:$0xff]
    %v57 = vld [vmem:[%s0 + $0x32] sm:$0x3f]
    %66 = vst [vmem:[#allocation1] ss:$4 sm:$0xff] %v50
    %s67 = scalar_lea.vmem [#allocation1], 1
    %68 = vst [vmem:[%s67] ss:$4 sm:$0xff] %v52
    %s69 = scalar_lea.vmem [#allocation1], 2
    %70 = vst [vmem:[%s69] ss:$4 sm:$0xff] %v54
    %s71 = scalar_lea.vmem [#allocation1], 3
    %72 = vst [vmem:[%s71] ss:$4 sm:$0xff] %v56
    %s73 = scalar_lea.vmem [#allocation1], 32
    %74 = vst [vmem:[%s73] ss:$4 sm:$0xff] %v51
    %s75 = scalar_lea.vmem [#allocation1], 33
    %76 = vst [vmem:[%s75] ss:$4 sm:$0xff] %v53
    %s77 = scalar_lea.vmem [#allocation1], 34
    %78 = vst [vmem:[%s77] ss:$4 sm:$0xff] %v55
    %s79 = scalar_lea.vmem [#allocation1], 35
    %80 = vst [vmem:[%s79] ss:$4 sm:$0xff] %v57
    %v81 = vld.sshfl [vmem:[#allocation1] sm:$0xff pattern:$0x73625140]
    %v82 = vld.sshfl [vmem:[#allocation1 + $0x8] sm:$0xff pattern:$0x73625140]
    %v83 = vld.sshfl [vmem:[#allocation1 + $0x10] sm:$0xff pattern:$0x73625140]
    %v84 = vld.sshfl [vmem:[#allocation1 + $0x18] sm:$0xff pattern:$0x73625140]
    %v85 = vld.sshfl [vmem:[#allocation1 + $0x20] sm:$0xff pattern:$0x73625140]
    %v86 = vld.sshfl [vmem:[#allocation1 + $0x28] sm:$0xff pattern:$0x73625140]
    %v87 = vld.sshfl [vmem:[#allocation1 + $0x30] sm:$0xff pattern:$0x73625140]
    %v95 = vpack.c.bf16 %v81, %v81
    %v96 = vpack.c.bf16 %v82, %v82
    %v97 = vpack.c.bf16 %v83, %v83
    %v98 = vpack.c.bf16 %v84, %v84
    %v99 = vpack.c.bf16 %v85, %v85
    %v100 = vpack.c.bf16 %v86, %v86
    %v101 = vpack.c.bf16 %v87, %v87
    %v102 = vld [vmem:[#allocation2] sm:$0xff]
    %v103 = vld [vmem:[#allocation2 + $0x8] sm:$0xff]
    %v104 = vld [vmem:[#allocation2 + $0x10] sm:$0xff]
    %v105 = vld [vmem:[#allocation2 + $0x18] sm:$0xff]
    %v106 = vld [vmem:[#allocation2 + $0x20] sm:$0xff]
    %v107 = vld [vmem:[#allocation2 + $0x28] sm:$0xff]
    %v108 = vld [vmem:[#allocation2 + $0x30] sm:$0xff]
    %v109 = vld [vmem:[#allocation2 + $0x38] sm:$0xff]
    %v110 = vld [vmem:[#allocation2 + $0x40] sm:$0xff]
    %v111 = vld [vmem:[#allocation2 + $0x48] sm:$0xff]
    %v112 = vld [vmem:[#allocation2 + $0x50] sm:$0xff]
    %v113 = vld [vmem:[#allocation2 + $0x58] sm:$0xff]
    %v114 = vld [vmem:[#allocation2 + $0x60] sm:$0xff]
    %v115 = vld [vmem:[#allocation2 + $0x68] sm:$0xff]
    %v116 = vld [vmem:[#allocation2 + $0x70] sm:$0xff]
    %v117 = vld [vmem:[#allocation2 + $0x78] sm:$0xff]
    %v118 = vld [vmem:[#allocation2 + $0x80] sm:$0xff]
    %v119 = vld [vmem:[#allocation2 + $0x88] sm:$0xff]
    %v120 = vld [vmem:[#allocation2 + $0x90] sm:$0xff]
    %v121 = vld [vmem:[#allocation2 + $0x98] sm:$0xff]
    %v122 = vld [vmem:[#allocation2 + $0xa0] sm:$0xff]
    %v123 = vld [vmem:[#allocation2 + $0xa8] sm:$0xff]
    %v124 = vld [vmem:[#allocation2 + $0xb0] sm:$0xff]
    %v125 = vld [vmem:[#allocation2 + $0xb8] sm:$0xff]
    %v126 = vld [vmem:[#allocation2 + $0xc0] sm:$0xff]
    %v127 = vld [vmem:[#allocation2 + $0xc8] sm:$0xff]
    %v128 = vld [vmem:[#allocation2 + $0xd0] sm:$0xff]
    %v129 = vld [vmem:[#allocation2 + $0xd8] sm:$0xff]
    %v130 = vld [vmem:[#allocation2 + $0xe0] sm:$0xff]
    %v131 = vld [vmem:[#allocation2 + $0xe8] sm:$0xff]
    %v132 = vld [vmem:[#allocation2 + $0xf0] sm:$0xff]
    %v133 = vld [vmem:[#allocation2 + $0xf8] sm:$0xff]
    %v134 = vld [vmem:[#allocation2 + $0x100] sm:$0xff]
    %v135 = vld [vmem:[#allocation2 + $0x108] sm:$0xff]
    %v136 = vld [vmem:[#allocation2 + $0x110] sm:$0xff]
    %v137 = vld [vmem:[#allocation2 + $0x118] sm:$0xff]
    %v138 = vld [vmem:[#allocation2 + $0x120] sm:$0xff]
    %v139 = vld [vmem:[#allocation2 + $0x128] sm:$0xff]
    %v140 = vld [vmem:[#allocation2 + $0x130] sm:$0xff]
    %v141 = vld [vmem:[#allocation2 + $0x138] sm:$0xff]
    %v142 = vld [vmem:[#allocation2 + $0x140] sm:$0xff]
    %v143 = vld [vmem:[#allocation2 + $0x148] sm:$0xff]
    %v144 = vld [vmem:[#allocation2 + $0x150] sm:$0xff]
    %v145 = vld [vmem:[#allocation2 + $0x158] sm:$0xff]
    %v146 = vld [vmem:[#allocation2 + $0x160] sm:$0xff]
    %v147 = vld [vmem:[#allocation2 + $0x168] sm:$0xff]
    %v148 = vld [vmem:[#allocation2 + $0x170] sm:$0xff]
    %v149 = vld [vmem:[#allocation2 + $0x178] sm:$0xff]
    %v150 = vld [vmem:[#allocation2 + $0x180] sm:$0xff]
    %v151 = vld [vmem:[#allocation2 + $0x188] sm:$0xff]
    %v152 = vld [vmem:[#allocation2 + $0x190] sm:$0xff]
    %v153 = vld [vmem:[#allocation2 + $0x198] sm:$0xff]
    %v154 = vld [vmem:[#allocation2 + $0x1a0] sm:$0xff]
    %v155 = vld [vmem:[#allocation2 + $0x1a8] sm:$0xff]
    %v156 = vld [vmem:[#allocation2 + $0x1b0] sm:$0xff]
    %v157 = vld [vmem:[#allocation2 + $0x1b8] sm:$0xff]
    %v158 = vld [vmem:[#allocation2 + $0x1c0] sm:$0xff]
    %v159 = vld [vmem:[#allocation2 + $0x1c8] sm:$0xff]
    %v160 = vld [vmem:[#allocation2 + $0x1d0] sm:$0xff]
    %v161 = vld [vmem:[#allocation2 + $0x1d8] sm:$0xff]
    %v162 = vld [vmem:[#allocation2 + $0x1e0] sm:$0xff]
    %v163 = vld [vmem:[#allocation2 + $0x1e8] sm:$0xff]
    %v164 = vld [vmem:[#allocation2 + $0x1f0] sm:$0xff]
    %v165 = vld [vmem:[#allocation2 + $0x1f8] sm:$0xff]
    %v166 = vld [vmem:[#allocation2 + $0x200] sm:$0xff]
    %v167 = vld [vmem:[#allocation2 + $0x208] sm:$0xff]
    %v168 = vld [vmem:[#allocation2 + $0x210] sm:$0xff]
    %v169 = vld [vmem:[#allocation2 + $0x218] sm:$0xff]
    %v170 = vld [vmem:[#allocation2 + $0x220] sm:$0xff]
    %v171 = vld [vmem:[#allocation2 + $0x228] sm:$0xff]
    %v172 = vld [vmem:[#allocation2 + $0x230] sm:$0xff]
    %v173 = vld [vmem:[#allocation2 + $0x238] sm:$0xff]
    %v174 = vld [vmem:[#allocation2 + $0x240] sm:$0xff]
    %v175 = vld [vmem:[#allocation2 + $0x248] sm:$0xff]
    %v176 = vld [vmem:[#allocation2 + $0x250] sm:$0xff]
    %v177 = vld [vmem:[#allocation2 + $0x258] sm:$0xff]
    %v178 = vld [vmem:[#allocation2 + $0x260] sm:$0xff]
    %v179 = vld [vmem:[#allocation2 + $0x268] sm:$0xff]
    %v180 = vld [vmem:[#allocation2 + $0x270] sm:$0xff]
    %v181 = vld [vmem:[#allocation2 + $0x278] sm:$0xff]
    %v182 = vld [vmem:[#allocation2 + $0x280] sm:$0xff]
    %v183 = vld [vmem:[#allocation2 + $0x288] sm:$0xff]
    %v184 = vld [vmem:[#allocation2 + $0x290] sm:$0xff]
    %v185 = vld [vmem:[#allocation2 + $0x298] sm:$0xff]
    %v186 = vld [vmem:[#allocation2 + $0x2a0] sm:$0xff]
    %v187 = vld [vmem:[#allocation2 + $0x2a8] sm:$0xff]
    %v188 = vld [vmem:[#allocation2 + $0x2b0] sm:$0xff]
    %v189 = vld [vmem:[#allocation2 + $0x2b8] sm:$0xff]
    %v190 = vld [vmem:[#allocation2 + $0x2c0] sm:$0xff]
    %v191 = vld [vmem:[#allocation2 + $0x2c8] sm:$0xff]
    %v192 = vld [vmem:[#allocation2 + $0x2d0] sm:$0xff]
    %v193 = vld [vmem:[#allocation2 + $0x2d8] sm:$0xff]
    %v194 = vld [vmem:[#allocation2 + $0x2e0] sm:$0xff]
    %v195 = vld [vmem:[#allocation2 + $0x2e8] sm:$0xff]
    %v196 = vld [vmem:[#allocation2 + $0x2f0] sm:$0xff]
    %v197 = vld [vmem:[#allocation2 + $0x2f8] sm:$0xff]
    %v198 = vld [vmem:[#allocation2 + $0x300] sm:$0xff]
    %v199 = vld [vmem:[#allocation2 + $0x308] sm:$0xff]
    %v200 = vld [vmem:[%s2] sm:$0x3]
    %v202 = vperm.slane %v200, 0
    %v203 = vperm.slane %v200, 1
    %v304 = vunpack.c.l.b16 %v102
    %v305 = vunpack.c.h.b16 %v102
    %v306 = vunpack.c.l.b16 %v103
    %v307 = vunpack.c.h.b16 %v103
    %v308 = vunpack.c.l.b16 %v104
    %v309 = vunpack.c.h.b16 %v104
    %v310 = vunpack.c.l.b16 %v105
    %v311 = vunpack.c.h.b16 %v105
    %v312 = vunpack.c.l.b16 %v106
    %v313 = vunpack.c.h.b16 %v106
    %v314 = vunpack.c.l.b16 %v107
    %v315 = vunpack.c.h.b16 %v107
    %v316 = vunpack.c.l.b16 %v108
    %v317 = vunpack.c.h.b16 %v108
    %v318 = vunpack.c.l.b16 %v109
    %v319 = vunpack.c.h.b16 %v109
    %v320 = vunpack.c.l.b16 %v110
    %v321 = vunpack.c.h.b16 %v110
    %v322 = vunpack.c.l.b16 %v111
    %v323 = vunpack.c.h.b16 %v111
    %v324 = vunpack.c.l.b16 %v112
    %v325 = vunpack.c.h.b16 %v112
    %v326 = vunpack.c.l.b16 %v113
    %v327 = vunpack.c.h.b16 %v113
    %v328 = vunpack.c.l.b16 %v114
    %v329 = vunpack.c.h.b16 %v114
    %v330 = vunpack.c.l.b16 %v115
    %v331 = vunpack.c.h.b16 %v115
    %v332 = vunpack.c.l.b16 %v116
    %v333 = vunpack.c.h.b16 %v116
    %v334 = vunpack.c.l.b16 %v117
    %v335 = vunpack.c.h.b16 %v117
    %v336 = vunpack.c.l.b16 %v118
    %v337 = vunpack.c.h.b16 %v118
    %v338 = vunpack.c.l.b16 %v119
    %v339 = vunpack.c.h.b16 %v119
    %v340 = vunpack.c.l.b16 %v120
    %v341 = vunpack.c.h.b16 %v120
    %v342 = vunpack.c.l.b16 %v121
    %v343 = vunpack.c.h.b16 %v121
    %v344 = vunpack.c.l.b16 %v122
    %v345 = vunpack.c.h.b16 %v122
    %v346 = vunpack.c.l.b16 %v123
    %v347 = vunpack.c.h.b16 %v123
    %v348 = vunpack.c.l.b16 %v124
    %v349 = vunpack.c.h.b16 %v124
    %v350 = vunpack.c.l.b16 %v125
    %v351 = vunpack.c.h.b16 %v125
    %v352 = vunpack.c.l.b16 %v126
    %v353 = vunpack.c.h.b16 %v126
    %v354 = vunpack.c.l.b16 %v127
    %v355 = vunpack.c.h.b16 %v127
    %v356 = vunpack.c.l.b16 %v128
    %v357 = vunpack.c.h.b16 %v128
    %v358 = vunpack.c.l.b16 %v129
    %v359 = vunpack.c.h.b16 %v129
    %v360 = vunpack.c.l.b16 %v130
    %v361 = vunpack.c.h.b16 %v130
    %v362 = vunpack.c.l.b16 %v131
    %v363 = vunpack.c.h.b16 %v131
    %v364 = vunpack.c.l.b16 %v132
    %v365 = vunpack.c.h.b16 %v132
    %v366 = vunpack.c.l.b16 %v133
    %v367 = vunpack.c.h.b16 %v133
    %v368 = vunpack.c.l.b16 %v134
    %v369 = vunpack.c.h.b16 %v134
    %v370 = vunpack.c.l.b16 %v135
    %v371 = vunpack.c.h.b16 %v135
    %v372 = vunpack.c.l.b16 %v136
    %v373 = vunpack.c.h.b16 %v136
    %v374 = vunpack.c.l.b16 %v137
    %v375 = vunpack.c.h.b16 %v137
    %v376 = vunpack.c.l.b16 %v138
    %v377 = vunpack.c.h.b16 %v138
    %v378 = vunpack.c.l.b16 %v139
    %v379 = vunpack.c.h.b16 %v139
    %v380 = vunpack.c.l.b16 %v140
    %v381 = vunpack.c.h.b16 %v140
    %v382 = vunpack.c.l.b16 %v141
    %v383 = vunpack.c.h.b16 %v141
    %v384 = vunpack.c.l.b16 %v142
    %v385 = vunpack.c.h.b16 %v142
    %v386 = vunpack.c.l.b16 %v143
    %v387 = vunpack.c.h.b16 %v143
    %v388 = vunpack.c.l.b16 %v144
    %v389 = vunpack.c.h.b16 %v144
    %v390 = vunpack.c.l.b16 %v145
    %v391 = vunpack.c.h.b16 %v145
    %v392 = vunpack.c.l.b16 %v146
    %v393 = vunpack.c.h.b16 %v146
    %v394 = vunpack.c.l.b16 %v147
    %v395 = vunpack.c.h.b16 %v147
    %v396 = vunpack.c.l.b16 %v148
    %v397 = vunpack.c.h.b16 %v148
    %v398 = vunpack.c.l.b16 %v149
    %v399 = vunpack.c.h.b16 %v149
    %v400 = vunpack.c.l.b16 %v150
    %v401 = vunpack.c.h.b16 %v150
    %v402 = vunpack.c.l.b16 %v151
    %v403 = vunpack.c.h.b16 %v151
    %v404 = vunpack.c.l.b16 %v152
    %v405 = vunpack.c.h.b16 %v152
    %v406 = vunpack.c.l.b16 %v153
    %v407 = vunpack.c.h.b16 %v153
    %v408 = vunpack.c.l.b16 %v154
    %v409 = vunpack.c.h.b16 %v154
    %v410 = vunpack.c.l.b16 %v155
    %v411 = vunpack.c.h.b16 %v155
    %v412 = vunpack.c.l.b16 %v156
    %v413 = vunpack.c.h.b16 %v156
    %v414 = vunpack.c.l.b16 %v157
    %v415 = vunpack.c.h.b16 %v157
    %v416 = vunpack.c.l.b16 %v158
    %v417 = vunpack.c.h.b16 %v158
    %v418 = vunpack.c.l.b16 %v159
    %v419 = vunpack.c.h.b16 %v159
    %v420 = vunpack.c.l.b16 %v160
    %v421 = vunpack.c.h.b16 %v160
    %v422 = vunpack.c.l.b16 %v161
    %v423 = vunpack.c.h.b16 %v161
    %v424 = vunpack.c.l.b16 %v162
    %v425 = vunpack.c.h.b16 %v162
    %v426 = vunpack.c.l.b16 %v163
    %v427 = vunpack.c.h.b16 %v163
    %v428 = vunpack.c.l.b16 %v164
    %v429 = vunpack.c.h.b16 %v164
    %v430 = vunpack.c.l.b16 %v165
    %v431 = vunpack.c.h.b16 %v165
    %v432 = vunpack.c.l.b16 %v166
    %v433 = vunpack.c.h.b16 %v166
    %v434 = vunpack.c.l.b16 %v167
    %v435 = vunpack.c.h.b16 %v167
    %v436 = vunpack.c.l.b16 %v168
    %v437 = vunpack.c.h.b16 %v168
    %v438 = vunpack.c.l.b16 %v169
    %v439 = vunpack.c.h.b16 %v169
    %v440 = vunpack.c.l.b16 %v170
    %v441 = vunpack.c.h.b16 %v170
    %v442 = vunpack.c.l.b16 %v171
    %v443 = vunpack.c.h.b16 %v171
    %v444 = vunpack.c.l.b16 %v172
    %v445 = vunpack.c.h.b16 %v172
    %v446 = vunpack.c.l.b16 %v173
    %v447 = vunpack.c.h.b16 %v173
    %v448 = vunpack.c.l.b16 %v174
    %v449 = vunpack.c.h.b16 %v174
    %v450 = vunpack.c.l.b16 %v175
    %v451 = vunpack.c.h.b16 %v175
    %v452 = vunpack.c.l.b16 %v176
    %v453 = vunpack.c.h.b16 %v176
    %v454 = vunpack.c.l.b16 %v177
    %v455 = vunpack.c.h.b16 %v177
    %v456 = vunpack.c.l.b16 %v178
    %v457 = vunpack.c.h.b16 %v178
    %v458 = vunpack.c.l.b16 %v179
    %v459 = vunpack.c.h.b16 %v179
    %v460 = vunpack.c.l.b16 %v180
    %v461 = vunpack.c.h.b16 %v180
    %v462 = vunpack.c.l.b16 %v181
    %v463 = vunpack.c.h.b16 %v181
    %v464 = vunpack.c.l.b16 %v182
    %v465 = vunpack.c.h.b16 %v182
    %v466 = vunpack.c.l.b16 %v183
    %v467 = vunpack.c.h.b16 %v183
    %v468 = vunpack.c.l.b16 %v184
    %v469 = vunpack.c.h.b16 %v184
    %v470 = vunpack.c.l.b16 %v185
    %v471 = vunpack.c.h.b16 %v185
    %v472 = vunpack.c.l.b16 %v186
    %v473 = vunpack.c.h.b16 %v186
    %v474 = vunpack.c.l.b16 %v187
    %v475 = vunpack.c.h.b16 %v187
    %v476 = vunpack.c.l.b16 %v188
    %v477 = vunpack.c.h.b16 %v188
    %v478 = vunpack.c.l.b16 %v189
    %v479 = vunpack.c.h.b16 %v189
    %v480 = vunpack.c.l.b16 %v190
    %v481 = vunpack.c.h.b16 %v190
    %v482 = vunpack.c.l.b16 %v191
    %v483 = vunpack.c.h.b16 %v191
    %v484 = vunpack.c.l.b16 %v192
    %v485 = vunpack.c.h.b16 %v192
    %v486 = vunpack.c.l.b16 %v193
    %v487 = vunpack.c.h.b16 %v193
    %v488 = vunpack.c.l.b16 %v194
    %v489 = vunpack.c.h.b16 %v194
    %v490 = vunpack.c.l.b16 %v195
    %v491 = vunpack.c.h.b16 %v195
    %v492 = vunpack.c.l.b16 %v196
    %v493 = vunpack.c.h.b16 %v196
    %v494 = vunpack.c.l.b16 %v197
    %v495 = vunpack.c.h.b16 %v197
    %v496 = vunpack.c.l.b16 %v198
    %v497 = vunpack.c.h.b16 %v198
    %v498 = vunpack.c.l.b16 %v199
    %v499 = vunpack.c.h.b16 %v199
    %v500 = vpack.c.b16 %v306, %v304
    %v501 = vpack.c.b16 %v307, %v305
    %v502 = vpack.c.b16 %v310, %v308
    %v503 = vpack.c.b16 %v311, %v309
    %v504 = vpack.c.b16 %v314, %v312
    %v505 = vpack.c.b16 %v315, %v313
    %v506 = vpack.c.b16 %v318, %v316
    %v507 = vpack.c.b16 %v319, %v317
    %v508 = vpack.c.b16 %v322, %v320
    %v509 = vpack.c.b16 %v323, %v321
    %v510 = vpack.c.b16 %v326, %v324
    %v511 = vpack.c.b16 %v327, %v325
    %v512 = vpack.c.b16 %v330, %v328
    %v513 = vpack.c.b16 %v331, %v329
    %v514 = vpack.c.b16 %v334, %v332
    %v515 = vpack.c.b16 %v335, %v333
    %v516 = vpack.c.b16 %v338, %v336
    %v517 = vpack.c.b16 %v339, %v337
    %v518 = vpack.c.b16 %v342, %v340
    %v519 = vpack.c.b16 %v343, %v341
    %v520 = vpack.c.b16 %v346, %v344
    %v521 = vpack.c.b16 %v347, %v345
    %v522 = vpack.c.b16 %v350, %v348
    %v523 = vpack.c.b16 %v351, %v349
    %v524 = vpack.c.b16 %v354, %v352
    %v525 = vpack.c.b16 %v355, %v353
    %v526 = vpack.c.b16 %v358, %v356
    %v527 = vpack.c.b16 %v359, %v357
    %v528 = vpack.c.b16 %v362, %v360
    %v529 = vpack.c.b16 %v363, %v361
    %v530 = vpack.c.b16 %v366, %v364
    %v531 = vpack.c.b16 %v367, %v365
    %v532 = vpack.c.b16 %v370, %v368
    %v533 = vpack.c.b16 %v371, %v369
    %v534 = vpack.c.b16 %v374, %v372
    %v535 = vpack.c.b16 %v375, %v373
    %v536 = vpack.c.b16 %v378, %v376
    %v537 = vpack.c.b16 %v379, %v377
    %v538 = vpack.c.b16 %v382, %v380
    %v539 = vpack.c.b16 %v383, %v381
    %v540 = vpack.c.b16 %v386, %v384
    %v541 = vpack.c.b16 %v387, %v385
    %v542 = vpack.c.b16 %v390, %v388
    %v543 = vpack.c.b16 %v391, %v389
    %v544 = vpack.c.b16 %v394, %v392
    %v545 = vpack.c.b16 %v395, %v393
    %v546 = vpack.c.b16 %v398, %v396
    %v547 = vpack.c.b16 %v399, %v397
    %v548 = vpack.c.b16 %v402, %v400
    %v549 = vpack.c.b16 %v403, %v401
    %v550 = vpack.c.b16 %v406, %v404
    %v551 = vpack.c.b16 %v407, %v405
    %v552 = vpack.c.b16 %v410, %v408
    %v553 = vpack.c.b16 %v411, %v409
    %v554 = vpack.c.b16 %v414, %v412
    %v555 = vpack.c.b16 %v415, %v413
    %v556 = vpack.c.b16 %v418, %v416
    %v557 = vpack.c.b16 %v419, %v417
    %v558 = vpack.c.b16 %v422, %v420
    %v559 = vpack.c.b16 %v423, %v421
    %v560 = vpack.c.b16 %v426, %v424
    %v561 = vpack.c.b16 %v427, %v425
    %v562 = vpack.c.b16 %v430, %v428
    %v563 = vpack.c.b16 %v431, %v429
    %v564 = vpack.c.b16 %v434, %v432
    %v565 = vpack.c.b16 %v435, %v433
    %v566 = vpack.c.b16 %v438, %v436
    %v567 = vpack.c.b16 %v439, %v437
    %v568 = vpack.c.b16 %v442, %v440
    %v569 = vpack.c.b16 %v443, %v441
    %v570 = vpack.c.b16 %v446, %v444
    %v571 = vpack.c.b16 %v447, %v445
    %v572 = vpack.c.b16 %v450, %v448
    %v573 = vpack.c.b16 %v451, %v449
    %v574 = vpack.c.b16 %v454, %v452
    %v575 = vpack.c.b16 %v455, %v453
    %v576 = vpack.c.b16 %v458, %v456
    %v577 = vpack.c.b16 %v459, %v457
    %v578 = vpack.c.b16 %v462, %v460
    %v579 = vpack.c.b16 %v463, %v461
    %v580 = vpack.c.b16 %v466, %v464
    %v581 = vpack.c.b16 %v467, %v465
    %v582 = vpack.c.b16 %v470, %v468
    %v583 = vpack.c.b16 %v471, %v469
    %v584 = vpack.c.b16 %v474, %v472
    %v585 = vpack.c.b16 %v475, %v473
    %v586 = vpack.c.b16 %v478, %v476
    %v587 = vpack.c.b16 %v479, %v477
    %v588 = vpack.c.b16 %v482, %v480
    %v589 = vpack.c.b16 %v483, %v481
    %v590 = vpack.c.b16 %v486, %v484
    %v591 = vpack.c.b16 %v487, %v485
    %v592 = vpack.c.b16 %v490, %v488
    %v593 = vpack.c.b16 %v491, %v489
    %v594 = vpack.c.b16 %v494, %v492
    %v595 = vpack.c.b16 %v495, %v493
    %v596 = vpack.c.b16 %v498, %v496
    %v597 = vpack.c.b16 %v499, %v497
    %vm696 = vcmask 130048
    %v698 = vsel %vm696, %v101, 0
    %700 = vmatpush.bf16.msra.mxu0 %v514
    %701 = vmatpush.bf16.msra.mxu0 %v512
    %702 = vmatpush.bf16.msra.mxu0 %v510
    %703 = vmatpush.bf16.msra.mxu0 %v508
    %704 = vmatpush.bf16.msra.mxu0 %v506
    %705 = vmatpush.bf16.msra.mxu0 %v504
    %706 = vmatpush.bf16.msra.mxu0 %v502
    %707 = vmatpush.bf16.msra.mxu0 %v500
    %708 = vmatmul.bf16.gmra.mxu0 %v95
    %v709 = vpop.f32.mrf.mxu0
    %v710 = vadd.f32 %v202, %v709
    %v711 = vpop.f32.mrf.mxu0
    %712 = vdwg.mxu0
    %713 = vmatpush.bf16.msra.mxu0 %v530
    %714 = vmatpush.bf16.msra.mxu0 %v528
    %715 = vmatpush.bf16.msra.mxu0 %v526
    %716 = vmatpush.bf16.msra.mxu0 %v524
    %717 = vmatpush.bf16.msra.mxu0 %v522
    %718 = vmatpush.bf16.msra.mxu0 %v520
    %719 = vmatpush.bf16.msra.mxu0 %v518
    %720 = vmatpush.bf16.msra.mxu0 %v516
    %721 = vmatmul.bf16.gmra.mxu0 %v96
    %v722 = vpop.f32.mrf.mxu0
    %v723 = vadd.f32 %v710, %v722
    %v724 = vpop.f32.mrf.mxu0
    %725 = vdwg.mxu0
    %726 = vmatpush.bf16.msra.mxu0 %v546
    %727 = vmatpush.bf16.msra.mxu0 %v544
    %728 = vmatpush.bf16.msra.mxu0 %v542
    %729 = vmatpush.bf16.msra.mxu0 %v540
    %730 = vmatpush.bf16.msra.mxu0 %v538
    %731 = vmatpush.bf16.msra.mxu0 %v536
    %732 = vmatpush.bf16.msra.mxu0 %v534
    %733 = vmatpush.bf16.msra.mxu0 %v532
    %734 = vmatmul.bf16.gmra.mxu0 %v97
    %v735 = vpop.f32.mrf.mxu0
    %v736 = vadd.f32 %v723, %v735
    %v737 = vpop.f32.mrf.mxu0
    %738 = vdwg.mxu0
    %739 = vmatpush.bf16.msra.mxu0 %v562
    %740 = vmatpush.bf16.msra.mxu0 %v560
    %741 = vmatpush.bf16.msra.mxu0 %v558
    %742 = vmatpush.bf16.msra.mxu0 %v556
    %743 = vmatpush.bf16.msra.mxu0 %v554
    %744 = vmatpush.bf16.msra.mxu0 %v552
    %745 = vmatpush.bf16.msra.mxu0 %v550
    %746 = vmatpush.bf16.msra.mxu0 %v548
    %747 = vmatmul.bf16.gmra.mxu0 %v98
    %v748 = vpop.f32.mrf.mxu0
    %v749 = vadd.f32 %v736, %v748
    %v750 = vpop.f32.mrf.mxu0
    %751 = vdwg.mxu0
    %752 = vmatpush.bf16.msra.mxu0 %v578
    %753 = vmatpush.bf16.msra.mxu0 %v576
    %754 = vmatpush.bf16.msra.mxu0 %v574
    %755 = vmatpush.bf16.msra.mxu0 %v572
    %756 = vmatpush.bf16.msra.mxu0 %v570
    %757 = vmatpush.bf16.msra.mxu0 %v568
    %758 = vmatpush.bf16.msra.mxu0 %v566
    %759 = vmatpush.bf16.msra.mxu0 %v564
    %760 = vmatmul.bf16.gmra.mxu0 %v99
    %v761 = vpop.f32.mrf.mxu0
    %v762 = vadd.f32 %v749, %v761
    %v763 = vpop.f32.mrf.mxu0
    %764 = vdwg.mxu0
    %765 = vmatpush.bf16.msra.mxu0 %v594
    %766 = vmatpush.bf16.msra.mxu0 %v592
    %767 = vmatpush.bf16.msra.mxu0 %v590
    %768 = vmatpush.bf16.msra.mxu0 %v588
    %769 = vmatpush.bf16.msra.mxu0 %v586
    %770 = vmatpush.bf16.msra.mxu0 %v584
    %771 = vmatpush.bf16.msra.mxu0 %v582
    %772 = vmatpush.bf16.msra.mxu0 %v580
    %773 = vmatmul.bf16.gmra.mxu0 %v100
    %v774 = vpop.f32.mrf.mxu0
    %v775 = vadd.f32 %v762, %v774
    %v776 = vpop.f32.mrf.mxu0
    %777 = vdwg.mxu0
    %778 = vmatpush.bf16.msra.mxu0 0
    %779 = vmatpush.bf16.msra.mxu0 0
    %780 = vmatpush.bf16.msra.mxu0 0
    %781 = vmatpush.bf16.msra.mxu0 0
    %782 = vmatpush.bf16.msra.mxu0 0
    %783 = vmatpush.bf16.msra.mxu0 0
    %784 = vmatpush.bf16.msra.mxu0 0
    %785 = vmatpush.bf16.msra.mxu0 %v596
    %786 = vmatmul.bf16.gmra.mxu0 %v698
    %v787 = vpop.f32.mrf.mxu0
    %v788 = vadd.f32 %v775, %v787
    %v789 = vpop.f32.mrf.mxu0
    %790 = vdwg.mxu0
    %791 = vmatpush.bf16.msra.mxu0 %v515
    %792 = vmatpush.bf16.msra.mxu0 %v513
    %793 = vmatpush.bf16.msra.mxu0 %v511
    %794 = vmatpush.bf16.msra.mxu0 %v509
    %795 = vmatpush.bf16.msra.mxu0 %v507
    %796 = vmatpush.bf16.msra.mxu0 %v505
    %797 = vmatpush.bf16.msra.mxu0 %v503
    %798 = vmatpush.bf16.msra.mxu0 %v501
    %799 = vmatmul.bf16.gmra.mxu0 %v95
    %v800 = vpop.f32.mrf.mxu0
    %v801 = vadd.f32 %v203, %v800
    %v802 = vpop.f32.mrf.mxu0
    %803 = vdwg.mxu0
    %804 = vmatpush.bf16.msra.mxu0 %v531
    %805 = vmatpush.bf16.msra.mxu0 %v529
    %806 = vmatpush.bf16.msra.mxu0 %v527
    %807 = vmatpush.bf16.msra.mxu0 %v525
    %808 = vmatpush.bf16.msra.mxu0 %v523
    %809 = vmatpush.bf16.msra.mxu0 %v521
    %810 = vmatpush.bf16.msra.mxu0 %v519
    %811 = vmatpush.bf16.msra.mxu0 %v517
    %812 = vmatmul.bf16.gmra.mxu0 %v96
    %v813 = vpop.f32.mrf.mxu0
    %v814 = vadd.f32 %v801, %v813
    %v815 = vpop.f32.mrf.mxu0
    %816 = vdwg.mxu0
    %817 = vmatpush.bf16.msra.mxu0 %v547
    %818 = vmatpush.bf16.msra.mxu0 %v545
    %819 = vmatpush.bf16.msra.mxu0 %v543
    %820 = vmatpush.bf16.msra.mxu0 %v541
    %821 = vmatpush.bf16.msra.mxu0 %v539
    %822 = vmatpush.bf16.msra.mxu0 %v537
    %823 = vmatpush.bf16.msra.mxu0 %v535
    %824 = vmatpush.bf16.msra.mxu0 %v533
    %825 = vmatmul.bf16.gmra.mxu0 %v97
    %v826 = vpop.f32.mrf.mxu0
    %v827 = vadd.f32 %v814, %v826
    %v828 = vpop.f32.mrf.mxu0
    %829 = vdwg.mxu0
    %830 = vmatpush.bf16.msra.mxu0 %v563
    %831 = vmatpush.bf16.msra.mxu0 %v561
    %832 = vmatpush.bf16.msra.mxu0 %v559
    %833 = vmatpush.bf16.msra.mxu0 %v557
    %834 = vmatpush.bf16.msra.mxu0 %v555
    %835 = vmatpush.bf16.msra.mxu0 %v553
    %836 = vmatpush.bf16.msra.mxu0 %v551
    %837 = vmatpush.bf16.msra.mxu0 %v549
    %838 = vmatmul.bf16.gmra.mxu0 %v98
    %v839 = vpop.f32.mrf.mxu0
    %v840 = vadd.f32 %v827, %v839
    %v841 = vpop.f32.mrf.mxu0
    %842 = vdwg.mxu0
    %843 = vmatpush.bf16.msra.mxu0 %v579
    %844 = vmatpush.bf16.msra.mxu0 %v577
    %845 = vmatpush.bf16.msra.mxu0 %v575
    %846 = vmatpush.bf16.msra.mxu0 %v573
    %847 = vmatpush.bf16.msra.mxu0 %v571
    %848 = vmatpush.bf16.msra.mxu0 %v569
    %849 = vmatpush.bf16.msra.mxu0 %v567
    %850 = vmatpush.bf16.msra.mxu0 %v565
    %851 = vmatmul.bf16.gmra.mxu0 %v99
    %v852 = vpop.f32.mrf.mxu0
    %v853 = vadd.f32 %v840, %v852
    %v854 = vpop.f32.mrf.mxu0
    %855 = vdwg.mxu0
    %856 = vmatpush.bf16.msra.mxu0 %v595
    %857 = vmatpush.bf16.msra.mxu0 %v593
    %858 = vmatpush.bf16.msra.mxu0 %v591
    %859 = vmatpush.bf16.msra.mxu0 %v589
    %860 = vmatpush.bf16.msra.mxu0 %v587
    %861 = vmatpush.bf16.msra.mxu0 %v585
    %862 = vmatpush.bf16.msra.mxu0 %v583
    %863 = vmatpush.bf16.msra.mxu0 %v581
    %864 = vmatmul.bf16.gmra.mxu0 %v100
    %v865 = vpop.f32.mrf.mxu0
    %v866 = vadd.f32 %v853, %v865
    %v867 = vpop.f32.mrf.mxu0
    %868 = vdwg.mxu0
    %869 = vmatpush.bf16.msra.mxu0 0
    %870 = vmatpush.bf16.msra.mxu0 0
    %871 = vmatpush.bf16.msra.mxu0 0
    %872 = vmatpush.bf16.msra.mxu0 0
    %873 = vmatpush.bf16.msra.mxu0 0
    %874 = vmatpush.bf16.msra.mxu0 0
    %875 = vmatpush.bf16.msra.mxu0 0
    %876 = vmatpush.bf16.msra.mxu0 %v597
    %877 = vmatmul.bf16.gmra.mxu0 %v698
    %v878 = vpop.f32.mrf.mxu0
    %v879 = vadd.f32 %v866, %v878
    %v880 = vpop.f32.mrf.mxu0
    %881 = vdwg.mxu0
    %v882 = vmax.f32 %v788, 0.0
    %v883 = vmax.f32 %v879, 0.0
    %v884 = vpack.c.bf16 %v882, %v882
    %v885 = vpack.c.bf16 %v883, %v883
    %v886 = vld [vmem:[%s3] sm:$0xf]
    %v887 = vld [vmem:[%s3 + $0x4] sm:$0xf]
    %v888 = vld [vmem:[%s3 + $0x8] sm:$0xf]
    %v889 = vld [vmem:[%s3 + $0xc] sm:$0xf]
    %v890 = vld [vmem:[%s3 + $0x10] sm:$0xf]
    %v891 = vld [vmem:[%s3 + $0x14] sm:$0xf]
    %v892 = vld [vmem:[%s3 + $0x18] sm:$0xf]
    %v893 = vld [vmem:[%s3 + $0x1c] sm:$0xf]
    %v894 = vld [vmem:[%s3 + $0x20] sm:$0xf]
    %v895 = vld [vmem:[%s3 + $0x24] sm:$0xf]
    %v896 = vld [vmem:[%s3 + $0x28] sm:$0xf]
    %v897 = vld [vmem:[%s3 + $0x2c] sm:$0xf]
    %v898 = vld [vmem:[%s3 + $0x30] sm:$0xf]
    %v899 = vld [vmem:[%s3 + $0x34] sm:$0xf]
    %v900 = vld [vmem:[%s3 + $0x38] sm:$0xf]
    %v901 = vld [vmem:[%s3 + $0x3c] sm:$0xf]
    %v902 = vld [vmem:[%s3 + $0x40] sm:$0xf]
    %v903 = vld [vmem:[%s3 + $0x44] sm:$0xf]
    %v904 = vld [vmem:[%s3 + $0x48] sm:$0xf]
    %v905 = vld [vmem:[%s3 + $0x4c] sm:$0xf]
    %v906 = vld [vmem:[%s3 + $0x50] sm:$0xf]
    %v907 = vld [vmem:[%s3 + $0x54] sm:$0xf]
    %v908 = vld [vmem:[%s3 + $0x58] sm:$0xf]
    %v909 = vld [vmem:[%s3 + $0x5c] sm:$0xf]
    %v910 = vld [vmem:[%s3 + $0x60] sm:$0xf]
    %v911 = vld [vmem:[%s3 + $0x64] sm:$0xf]
    %v912 = vld [vmem:[%s3 + $0x68] sm:$0xf]
    %v913 = vld [vmem:[%s3 + $0x6c] sm:$0xf]
    %v914 = vld [vmem:[%s3 + $0x70] sm:$0xf]
    %v915 = vld [vmem:[%s3 + $0x74] sm:$0xf]
    %v916 = vld [vmem:[%s3 + $0x78] sm:$0xf]
    %v917 = vld [vmem:[%s3 + $0x7c] sm:$0xf]
    %v918 = vld [vmem:[%s4] sm:$0x1]
    %v920 = vperm.slane %v918, 0
    %v954 = vunpack.c.l.b16 %v886
    %v955 = vunpack.c.l.b16 %v887
    %v956 = vunpack.c.l.b16 %v888
    %v957 = vunpack.c.l.b16 %v889
    %v958 = vunpack.c.l.b16 %v890
    %v959 = vunpack.c.l.b16 %v891
    %v960 = vunpack.c.l.b16 %v892
    %v961 = vunpack.c.l.b16 %v893
    %v962 = vunpack.c.l.b16 %v894
    %v963 = vunpack.c.l.b16 %v895
    %v964 = vunpack.c.l.b16 %v896
    %v965 = vunpack.c.l.b16 %v897
    %v966 = vunpack.c.l.b16 %v898
    %v967 = vunpack.c.l.b16 %v899
    %v968 = vunpack.c.l.b16 %v900
    %v969 = vunpack.c.l.b16 %v901
    %v970 = vunpack.c.l.b16 %v902
    %v971 = vunpack.c.l.b16 %v903
    %v972 = vunpack.c.l.b16 %v904
    %v973 = vunpack.c.l.b16 %v905
    %v974 = vunpack.c.l.b16 %v906
    %v975 = vunpack.c.l.b16 %v907
    %v976 = vunpack.c.l.b16 %v908
    %v977 = vunpack.c.l.b16 %v909
    %v978 = vunpack.c.l.b16 %v910
    %v979 = vunpack.c.l.b16 %v911
    %v980 = vunpack.c.l.b16 %v912
    %v981 = vunpack.c.l.b16 %v913
    %v982 = vunpack.c.l.b16 %v914
    %v983 = vunpack.c.l.b16 %v915
    %v984 = vunpack.c.l.b16 %v916
    %v985 = vunpack.c.l.b16 %v917
    %v986 = vpack.c.b16 %v955, %v954
    %v987 = vpack.c.b16 %v957, %v956
    %v988 = vpack.c.b16 %v959, %v958
    %v989 = vpack.c.b16 %v961, %v960
    %v990 = vpack.c.b16 %v963, %v962
    %v991 = vpack.c.b16 %v965, %v964
    %v992 = vpack.c.b16 %v967, %v966
    %v993 = vpack.c.b16 %v969, %v968
    %v994 = vpack.c.b16 %v971, %v970
    %v995 = vpack.c.b16 %v973, %v972
    %v996 = vpack.c.b16 %v975, %v974
    %v997 = vpack.c.b16 %v977, %v976
    %v998 = vpack.c.b16 %v979, %v978
    %v999 = vpack.c.b16 %v981, %v980
    %v1000 = vpack.c.b16 %v983, %v982
    %v1001 = vpack.c.b16 %v985, %v984
    %1018 = vmatpush.bf16.msra.mxu0 %v993
    %1019 = vmatpush.bf16.msra.mxu0 %v992
    %1020 = vmatpush.bf16.msra.mxu0 %v991
    %1021 = vmatpush.bf16.msra.mxu0 %v990
    %1022 = vmatpush.bf16.msra.mxu0 %v989
    %1023 = vmatpush.bf16.msra.mxu0 %v988
    %1024 = vmatpush.bf16.msra.mxu0 %v987
    %1025 = vmatpush.bf16.msra.mxu0 %v986
    %1026 = vmatmul.bf16.gmra.mxu0 %v884
    %v1027 = vpop.f32.mrf.mxu0
    %v1028 = vadd.f32 %v920, %v1027
    %v1029 = vpop.f32.mrf.mxu0
    %1030 = vdwg.mxu0
    %1031 = vmatpush.bf16.msra.mxu0 %v1001
    %1032 = vmatpush.bf16.msra.mxu0 %v1000
    %1033 = vmatpush.bf16.msra.mxu0 %v999
    %1034 = vmatpush.bf16.msra.mxu0 %v998
    %1035 = vmatpush.bf16.msra.mxu0 %v997
    %1036 = vmatpush.bf16.msra.mxu0 %v996
    %1037 = vmatpush.bf16.msra.mxu0 %v995
    %1038 = vmatpush.bf16.msra.mxu0 %v994
    %1039 = vmatmul.bf16.gmra.mxu0 %v885
    %v1040 = vpop.f32.mrf.mxu0
    %v1041 = vadd.f32 %v1028, %v1040
    %v1042 = vpop.f32.mrf.mxu0
    %1043 = vdwg.mxu0
    %v1044 = vmax.f32 %v1041, 0.0
    %v1045 = vpack.c.bf16 %v1044, %v1044
    %v1046 = vld [vmem:[%s5] sm:$0xf]
    %v1047 = vld [vmem:[%s5 + $0x4] sm:$0xf]
    %v1048 = vld [vmem:[%s5 + $0x8] sm:$0xf]
    %v1049 = vld [vmem:[%s5 + $0xc] sm:$0xf]
    %v1050 = vld [vmem:[%s5 + $0x10] sm:$0xf]
    %v1051 = vld [vmem:[%s5 + $0x14] sm:$0xf]
    %v1052 = vld [vmem:[%s5 + $0x18] sm:$0xf]
    %v1053 = vld [vmem:[%s5 + $0x1c] sm:$0xf]
    %v1054 = vld [vmem:[%s5 + $0x20] sm:$0xf]
    %v1055 = vld [vmem:[%s5 + $0x24] sm:$0xf]
    %v1056 = vld [vmem:[%s5 + $0x28] sm:$0xf]
    %v1057 = vld [vmem:[%s5 + $0x2c] sm:$0xf]
    %v1058 = vld [vmem:[%s5 + $0x30] sm:$0xf]
    %v1059 = vld [vmem:[%s5 + $0x34] sm:$0xf]
    %v1060 = vld [vmem:[%s5 + $0x38] sm:$0xf]
    %v1061 = vld [vmem:[%s5 + $0x3c] sm:$0xf]
    %v1062 = vld [vmem:[%s6] sm:$0x1]
    %v1064 = vperm.slane %v1062, 0
    %v1082 = vunpack.c.l.b16 %v1046
    %v1083 = vunpack.c.l.b16 %v1047
    %v1084 = vunpack.c.l.b16 %v1048
    %v1085 = vunpack.c.l.b16 %v1049
    %v1086 = vunpack.c.l.b16 %v1050
    %v1087 = vunpack.c.l.b16 %v1051
    %v1088 = vunpack.c.l.b16 %v1052
    %v1089 = vunpack.c.l.b16 %v1053
    %v1090 = vunpack.c.l.b16 %v1054
    %v1091 = vunpack.c.l.b16 %v1055
    %v1092 = vunpack.c.l.b16 %v1056
    %v1093 = vunpack.c.l.b16 %v1057
    %v1094 = vunpack.c.l.b16 %v1058
    %v1095 = vunpack.c.l.b16 %v1059
    %v1096 = vunpack.c.l.b16 %v1060
    %v1097 = vunpack.c.l.b16 %v1061
    %v1098 = vpack.c.b16 %v1083, %v1082
    %v1099 = vpack.c.b16 %v1085, %v1084
    %v1100 = vpack.c.b16 %v1087, %v1086
    %v1101 = vpack.c.b16 %v1089, %v1088
    %v1102 = vpack.c.b16 %v1091, %v1090
    %v1103 = vpack.c.b16 %v1093, %v1092
    %v1104 = vpack.c.b16 %v1095, %v1094
    %v1105 = vpack.c.b16 %v1097, %v1096
    %1114 = vmatpush.bf16.msra.mxu0 %v1105
    %1115 = vmatpush.bf16.msra.mxu0 %v1104
    %1116 = vmatpush.bf16.msra.mxu0 %v1103
    %1117 = vmatpush.bf16.msra.mxu0 %v1102
    %1118 = vmatpush.bf16.msra.mxu0 %v1101
    %1119 = vmatpush.bf16.msra.mxu0 %v1100
    %1120 = vmatpush.bf16.msra.mxu0 %v1099
    %1121 = vmatpush.bf16.msra.mxu0 %v1098
    %1122 = vmatmul.bf16.gmra.mxu0 %v1045
    %v1123 = vpop.f32.mrf.mxu0
    %v1124 = vadd.f32 %v1064, %v1123
    %v1125 = vpop.f32.mrf.mxu0
    %1126 = vdwg.mxu0
    %v1127 = vmax.f32 %v1124, 0.0
    %v1128 = vpack.c.bf16 %v1127, %v1127
    %v1129 = vld [vmem:[%s7] sm:$0xf]
    %v1130 = vld [vmem:[%s7 + $0x4] sm:$0xf]
    %v1131 = vld [vmem:[%s7 + $0x8] sm:$0xf]
    %v1132 = vld [vmem:[%s7 + $0xc] sm:$0xf]
    %v1133 = vld [vmem:[%s7 + $0x10] sm:$0xf]
    %v1134 = vld [vmem:[%s7 + $0x14] sm:$0xf]
    %v1135 = vld [vmem:[%s7 + $0x18] sm:$0xf]
    %v1136 = vld [vmem:[%s7 + $0x1c] sm:$0xf]
    %v1137 = vld [vmem:[%s8] sm:$0x1]
    %v1139 = vperm.slane %v1137, 0
    %v1149 = vunpack.c.l.b16 %v1129
    %v1150 = vunpack.c.l.b16 %v1130
    %v1151 = vunpack.c.l.b16 %v1131
    %v1152 = vunpack.c.l.b16 %v1132
    %v1153 = vunpack.c.l.b16 %v1133
    %v1154 = vunpack.c.l.b16 %v1134
    %v1155 = vunpack.c.l.b16 %v1135
    %v1156 = vunpack.c.l.b16 %v1136
    %v1157 = vpack.c.b16 %v1150, %v1149
    %v1158 = vpack.c.b16 %v1152, %v1151
    %v1159 = vpack.c.b16 %v1154, %v1153
    %v1160 = vpack.c.b16 %v1156, %v1155
    %vm1165 = vcmask 523264
    %v1167 = vsel %vm1165, %v1128, 0
    %1169 = vmatpush.bf16.msra.mxu0 0
    %1170 = vmatpush.bf16.msra.mxu0 0
    %1171 = vmatpush.bf16.msra.mxu0 0
    %1172 = vmatpush.bf16.msra.mxu0 0
    %1173 = vmatpush.bf16.msra.mxu0 %v1160
    %1174 = vmatpush.bf16.msra.mxu0 %v1159
    %1175 = vmatpush.bf16.msra.mxu0 %v1158
    %1176 = vmatpush.bf16.msra.mxu0 %v1157
    %1177 = vmatmul.bf16.gmra.mxu0 %v1167
    %v1178 = vpop.f32.mrf.mxu0
    %v1179 = vadd.f32 %v1139, %v1178
    %v1180 = vpop.f32.mrf.mxu0
    %1181 = vdwg.mxu0
    %vm1182 = vcmask 80896
    %1183 = vst.msk [vmem:[#allocation5] sm:$0xff] %vm1182, %v1179
    // Predicated region
    $region42: #{mlp_forward.1} parent=1 // pred_check
      _
    $region43: #{mlp_forward.1} parent=1 // pred_check_branch
      %1185 = sbr.rel (0) target = $region45
    $region44: #{mlp_forward.1} parent=1 // pred_region
      %1187 = vsyncadd [#allocation4], 96
      %s1188 = sshll.u32 [#allocation5], 4
      %s1189 = int_to_ptr.vmem [resolvable:$true] %s1188
      %s1190 = sshll.u32 %s9, 4
      %s1191 = int_to_ptr.hbm [resolvable:$true] %s1190
      %1196 = dma.vmem_to_hbm [thread:$0]  %s1189, 32, %s1191, [#allocation4], 32, 32, 2
    $region45: #{mlp_forward.1} parent=1 // pred_fallthru
      _
    // Predicated region
    $region46: #{mlp_forward.1} parent=1 // pred_check
      _
    $region47: #{mlp_forward.1} parent=1 // pred_check_branch
      %1198 = sbr.rel (0) target = $region49
    $region48: #{mlp_forward.1} parent=1 // pred_region
      %1200 = dma.done [#allocation4], 128
    $region49: #{mlp_forward.1} parent=1 // pred_fallthru
      _
    %1201 = vsyncpa [#allocation3], 1
    %1202 = vsyncpa [#allocation4], 1

</llo_original>
